<compile_context>
chip_gen: v5e
topology: v5e:2x2
jax: 0.10.0
libtpu: 0.0.40
codegen_flags: <defaults>
</compile_context>

<pallas_src>
import functools
import math

import jax
import jax.numpy as jnp
import numpy as np
from jax.experimental import pallas as pl
from jax.experimental.pallas import tpu as pltpu


def _round_up(a, b):
    return ((a + b - 1) // b) * b


# ----------------------------------------------------------------------------
# Pallas kernels: one tile of frames -> one lane-dense bf16 GEMM on the MXU,
# f32 accumulation, optional fused bias epilogue.
# ----------------------------------------------------------------------------
def _gemm_kernel(x_ref, m_ref, o_ref):
    """x_ref: (TN, J*Fin), m_ref: (J*Fin, J*Fout) bf16, o_ref: (TN, J*Fout)."""
    acc = jnp.dot(x_ref[...].astype(m_ref.dtype), m_ref[...],
                  preferred_element_type=jnp.float32)
    o_ref[...] = acc.astype(o_ref.dtype)


def _gemm_bias_kernel(x_ref, m_ref, b_ref, o_ref):
    """Same as _gemm_kernel plus fused bias add; b_ref: (1, J*Fout) f32."""
    acc = jnp.dot(x_ref[...].astype(m_ref.dtype), m_ref[...],
                  preferred_element_type=jnp.float32)
    o_ref[...] = (acc + b_ref[...]).astype(o_ref.dtype)


# ----------------------------------------------------------------------------
# Parameter-only precompute: adjacency softmax (kept in f32) folded with W0/W1.
# ----------------------------------------------------------------------------
def build_fused_matrix(W, adj, e, *, dtype=jnp.bfloat16):
    """W: (2, Fin, Fout), adj: (J, J), e: (Fout, nnz) -> M: (J*Fin, J*Fout)."""
    J = adj.shape[0]
    Fin, Fout = W.shape[1], W.shape[2]

    mask = (adj > 0).reshape(-1)                                 # (J*J,)
    pos = jnp.cumsum(mask.astype(jnp.int32)) - 1                 # index into e row
    e_full = e[:, pos]                                           # (Fout, J*J)
    # mask/softmax stay in f32 for exactness; only the final fold is cast.
    logits = jnp.where(mask[None, :], e_full,
                       jnp.float32(-9e15)).reshape(Fout, J, J)   # (C, J, K)
    A = jax.nn.softmax(logits, axis=2)                           # (C, J, K)

    eye = jnp.eye(J, dtype=A.dtype)
    d = jnp.sum(A * eye[None], axis=2).T                         # (J, C): A[c,j,j]
    A_off = A * (1.0 - eye)[None]                                # zero diagonal

    # M[k, f, j, c] = A_off[c,j,k]*W1[f,c] + delta_{j,k}*d[j,c]*W0[f,c]
    M_off = jnp.einsum('cjk,fc->kfjc', A_off, W[1])
    M_diag = jnp.einsum('jk,jc,fc->kfjc', eye, d, W[0])
    return (M_off + M_diag).reshape(J * Fin, J * Fout).astype(dtype)


def _choose_tile_n(n_rows, tile_n_max):
    """Frame-tile size: (8,128)-compliant, >= 2 grid steps when possible."""
    if n_rows < 8:
        return n_rows                      # block == full dim -> legal single step
    # Aim for at least 2 grid steps so both v7x TensorCores get work.
    return max(8, min(tile_n_max, _round_up(pl.cdiv(n_rows, 2), 8)))


# ----------------------------------------------------------------------------
# Public entry point.  Keep the parameter fold inside the same jit as the
# pallas_call (no per-step eager small-op overhead).
# ----------------------------------------------------------------------------
@functools.partial(jax.jit, static_argnames=("tile_n_max", "out_dtype"))
def sem_ch_graph_conv(x, W, adj, e, bias=None, *, tile_n_max=512, out_dtype=None):
    """x: (B, T, J, Fin), W: (2, Fin, Fout), adj: (J, J), e: (Fout, nnz)."""
    B, T, J, Fin = x.shape
    Fout = W.shape[2]
    N = B * T
    K = J * Fin            # GEMM contraction width (multiple of 128)
    Cout = J * Fout        # GEMM output width      (multiple of 128)
    out_dtype = x.dtype if out_dtype is None else out_dtype

    M = build_fused_matrix(W, adj, e)                            # (K, Cout) bf16
    xf = x.reshape(N, K)

    tile_n = _choose_tile_n(N, tile_n_max)
    grid = (pl.cdiv(N, tile_n),)           # ragged last block masked by Pallas

    in_specs = [
        pl.BlockSpec((tile_n, K), lambda i: (i, 0)),
        pl.BlockSpec((K, Cout), lambda i: (0, 0)),   # constant -> no re-DMA
    ]
    operands = [xf, M]
    kernel = _gemm_kernel
    if bias is not None:
        # out[n, j*Fout + c] += bias[c]  ->  fused bias row of width J*Fout.
        bias_row = jnp.tile(bias.astype(jnp.float32), J).reshape(1, Cout)
        in_specs.append(pl.BlockSpec((1, Cout), lambda i: (0, 0)))
        operands.append(bias_row)
        kernel = _gemm_bias_kernel

    out = pl.pallas_call(
        kernel,
        out_shape=jax.ShapeDtypeStruct((N, Cout), out_dtype),
        grid=grid,
        in_specs=in_specs,
        out_specs=pl.BlockSpec((tile_n, Cout), lambda i: (i, 0)),
        compiler_params=pltpu.CompilerParams(
            dimension_semantics=("parallel",),
            vmem_limit_bytes=32 << 20,
        ),
    )(*operands)

    return out.reshape(B, T, J, Fout)


# ----------------------------------------------------------------------------
# Pure-JAX (f32) replica of the PyTorch forward for verification.
# ----------------------------------------------------------------------------
def reference(x, W, adj, e):
    J = adj.shape[0]
    C = W.shape[2]
    mask = (adj > 0).reshape(-1)
    pos = jnp.cumsum(mask.astype(jnp.int32)) - 1
    e_full = e[:, pos]
    logits = jnp.where(mask[None, :], e_full, jnp.float32(-9e15)).reshape(C, J, J)
    A = jax.nn.softmax(logits, axis=2)
    E = jnp.eye(J, dtype=jnp.float32)
    h0 = x @ W[0]
    h1 = x @ W[1]
    return (jnp.einsum('cjk,btkc->btjc', A * E[None], h0)
            + jnp.einsum('cjk,btkc->btjc', A * (1.0 - E)[None], h1))


if __name__ == "__main__":
    B, T, J, Fin, Fout = 2, 5, 16, 32, 32      # N = 10 -> exercises ragged block

    key = jax.random.PRNGKey(0)
    k_x, k_w, k_b = jax.random.split(key, 3)

    x = jax.random.normal(k_x, (B, T, J, Fin), dtype=jnp.float32)

    # W ~ xavier_uniform(gain=1.414): (2, in_features, out_features)
    bound = 1.414 * math.sqrt(6.0 / (Fin + Fout))
    W = jax.random.uniform(k_w, (2, Fin, Fout), minval=-bound, maxval=bound,
                           dtype=jnp.float32)

    # adjacency over J joints: self-loops + chain edges (entries > 0 are kept)
    adj = (jnp.eye(J) + jnp.eye(J, k=1) + jnp.eye(J, k=-1)).astype(jnp.float32)
    nnz = int(jnp.sum(adj > 0))
    e = jnp.ones((Fout, nnz), dtype=jnp.float32)     # nn.init.constant_(1)

    ref = reference(x, W, adj, e)

    # bias=False path (module default).  bf16 MXU operands vs. f32 reference:
    # expect ~1e-2 relative differences.
    out = jax.block_until_ready(sem_ch_graph_conv(x, W, adj, e))
    np.testing.assert_allclose(np.asarray(out), np.asarray(ref),
                               rtol=3e-2, atol=5e-2)

    # bias=True path (fused epilogue).
    stdv = 1.0 / math.sqrt(Fin)
    b = jax.random.uniform(k_b, (Fout,), minval=-stdv, maxval=stdv,
                           dtype=jnp.float32)
    out_b = jax.block_until_ready(sem_ch_graph_conv(x, W, adj, e, b))
    np.testing.assert_allclose(np.asarray(out_b),
                               np.asarray(ref + b.reshape(1, 1, 1, Fout)),
                               rtol=3e-2, atol=5e-2)

    print("KERNEL_OK")
</pallas_src>

<mosaic_0001>
module attributes {stable_mosaic.version = 11 : i64} {
  func.func @_gemm_kernel(%arg0: i32, %arg1: memref<8x512xf32, #tpu.memory_space<vmem>>, %arg2: memref<512x512xbf16, #tpu.memory_space<vmem>>, %arg3: memref<8x512xf32, #tpu.memory_space<vmem>>) attributes {dimension_semantics = [#tpu.dimension_semantics<parallel>], iteration_bounds = array<i64: 2>, scalar_prefetch = 0 : i64, scratch_operands = 0 : i64, tpu.core_type = #tpu.core_type<tc>, window_params = [{transform_indices = @transform_0, window_bounds = array<i64: 8, 512>}, {pipeline_mode = #tpu.pipeline_mode<synchronous>, transform_indices = @transform_1, window_bounds = array<i64: 512, 512>}, {transform_indices = @transform_2, window_bounds = array<i64: 8, 512>}]} {
    %c0 = arith.constant 0 : index
    %c0_0 = arith.constant 0 : index
    %0 = vector.load %arg1[%c0, %c0_0] : memref<8x512xf32, #tpu.memory_space<vmem>>, vector<8x512xf32>
    %1 = arith.truncf %0 : vector<8x512xf32> to vector<8x512xbf16>
    %c0_1 = arith.constant 0 : index
    %c0_2 = arith.constant 0 : index
    %2 = vector.load %arg2[%c0_1, %c0_2] : memref<512x512xbf16, #tpu.memory_space<vmem>>, vector<512x512xbf16>
    %cst = arith.constant dense<0.000000e+00> : vector<8x512xf32>
    %3 = tpu.matmul %1, %2, %cst {dimension_numbers = #tpu.dot_dimension_numbers<[1], [0], [0], [1], [0, 0, 1, 1], [], []>} : vector<8x512xbf16>, vector<512x512xbf16>, vector<8x512xf32> -> vector<8x512xf32>
    %c0_3 = arith.constant 0 : index
    %c0_4 = arith.constant 0 : index
    %4 = vector.load %arg3[%c0_3, %c0_4] : memref<8x512xf32, #tpu.memory_space<vmem>>, vector<8x512xf32>
    tpu.vector_store %arg3[%c0_3, %c0_4], %3 {strides = array<i32>} : memref<8x512xf32, #tpu.memory_space<vmem>>, vector<8x512xf32>,
    return
  }
  func.func @transform_0(%arg0: i32) -> (i32, i32) {
    %c0_i32 = arith.constant 0 : i32
    %c0_i32_0 = arith.constant 0 : i32
    return %arg0, %c0_i32 : i32, i32
  }
  func.func @transform_1(%arg0: i32) -> (i32, i32) {
    %c0_i32 = arith.constant 0 : i32
    %c0_i32_0 = arith.constant 0 : i32
    %c0_i32_1 = arith.constant 0 : i32
    return %c0_i32, %c0_i32_0 : i32, i32
  }
  func.func @transform_2(%arg0: i32) -> (i32, i32) {
    %c0_i32 = arith.constant 0 : i32
    %c0_i32_0 = arith.constant 0 : i32
    return %arg0, %c0_i32 : i32, i32
  }
}

</mosaic_0001>

<llo_original>
// kernel: sem_ch_graph_conv.1
$region0: #{sem_ch_graph_conv.1}
  #allocation0 [shape = 'u32[]', space=smem, size = 0x4, offset = 0x4, fixed_abs, tag = 'smem constant byte address 0x4 - core index']
  #allocation1 [shape = 'u32[72,128]{1,0:T(1,128)}', space=vmem, size = 0x9000, scoped, tag = 'internal scratch']
  %s0 = inlined_call_operand.vmem [shape: f32[10,512], index: 0, kind: input, shape index: {}]
  %s1 = inlined_call_operand.vmem [shape: bf16[512,512], index: 1, kind: input, shape index: {}]
  %s2 = inlined_call_operand.vmem [shape: f32[10,512], index: 2, kind: output, shape index: {}]
  %s3 = sld [smem:[#allocation0]]
  $region41: #{sem_ch_graph_conv.1} parent=0
    _
  %s5 = ssub.s32 1, %s3
  %s6 = scalar_select 0, %s5, %s3
  loop: start=0, step=1, limit=4
  $region2: #{sem_ch_graph_conv.1} parent=0 // loop_pre_header
    _
  $region3: #{sem_ch_graph_conv.1} parent=0 // loop_header
    %s8 = sphi 0, %s12
    %p9 = scmp.ge.s32.totalorder %s8, 4
    %s18 = sphi 0, %s20
    %s21 = sphi 0, %s18
    %s22 = sphi 0, %s21
    %s38 = sphi 0, %s22
    %s42 = sphi 0, %s42
    %s44 = sphi 0, %s42
    %s45 = sphi 0, %s44
    %s59 = sphi 0, %s45
    %s65 = sphi 0, %s67
    %s68 = sphi 0, %s65
    %s69 = sphi 0, %s68
    %s85 = sphi 0, %s69
  $region4: #{sem_ch_graph_conv.1} parent=0 // loop_header_branch
    %11 = sbr.rel (%p9) target = $region8
  $region5: #{sem_ch_graph_conv.1} parent=0 // loop_body
    %s13 = ssub.s32 %s8, 1
    %s14 = ssub.s32 %s8, 2
    %s15 = sadd.s32 %s8, 1
    %s16 = ssub.s32 %s8, %s15
    %p17 = scmp.eq.s32.totalorder %s16, 0
    %s19 = sadd.s32 %s18, 1
    %s20 = scalar_select %p17, %s18, %s19
    %p23 = pneg %p17
    %p24 = scmp.eq.s32.totalorder %s8, 1
    %p25 = por %p23, %p24
    %p26 = scmp.ne.s32.totalorder %s18, %s21
    %p27 = scmp.eq.s32.totalorder %s8, 0
    %p28 = por %p26, %p27
    %p29 = scmp.ne.s32.totalorder %s18, %s21
    %p30 = scmp.eq.s32.totalorder %s13, 1
    %p31 = por %p29, %p30
    %p32 = scmp.ne.s32.totalorder %s21, %s22
    %p33 = scmp.eq.s32.totalorder %s13, 0
    %p34 = por %p32, %p33
    %p35 = scmp.ne.s32.totalorder %s21, %s22
    %p36 = scmp.eq.s32.totalorder %s14, 1
    %p37 = por %p35, %p36
    %p39 = scmp.ne.s32.totalorder %s22, %s38
    %p40 = scmp.eq.s32.totalorder %s14, 0
    %p41 = por %p39, %p40
    %s43 = sadd.s32 %s42, 1
    %p46 = scmp.eq.s32.totalorder %s8, 1
    %p47 = scmp.ne.s32.totalorder %s42, %s44
    %p48 = scmp.eq.s32.totalorder %s8, 0
    %p49 = por %p47, %p48
    %p50 = scmp.ne.s32.totalorder %s42, %s44
    %p51 = scmp.eq.s32.totalorder %s13, 1
    %p52 = por %p50, %p51
    %p53 = scmp.ne.s32.totalorder %s44, %s45
    %p54 = scmp.eq.s32.totalorder %s13, 0
    %p55 = por %p53, %p54
    %p56 = scmp.ne.s32.totalorder %s44, %s45
    %p57 = scmp.eq.s32.totalorder %s14, 1
    %p58 = por %p56, %p57
    %p60 = scmp.ne.s32.totalorder %s45, %s59
    %p61 = scmp.eq.s32.totalorder %s14, 0
    %p62 = por %p60, %p61
    %s63 = ssub.s32 %s8, %s15
    %p64 = scmp.eq.s32.totalorder %s63, 0
    %s66 = sadd.s32 %s65, 1
    %s67 = scalar_select %p64, %s65, %s66
    %p70 = pneg %p64
    %p71 = scmp.eq.s32.totalorder %s8, 1
    %p72 = por %p70, %p71
    %p73 = scmp.ne.s32.totalorder %s65, %s68
    %p74 = scmp.eq.s32.totalorder %s8, 0
    %p75 = por %p73, %p74
    %p76 = scmp.ne.s32.totalorder %s65, %s68
    %p77 = scmp.eq.s32.totalorder %s13, 1
    %p78 = por %p76, %p77
    %p79 = scmp.ne.s32.totalorder %s68, %s69
    %p80 = scmp.eq.s32.totalorder %s13, 0
    %p81 = por %p79, %p80
    %p82 = scmp.ne.s32.totalorder %s68, %s69
    %p83 = scmp.eq.s32.totalorder %s14, 1
    %p84 = por %p82, %p83
    %p86 = scmp.ne.s32.totalorder %s69, %s85
    %p87 = scmp.eq.s32.totalorder %s14, 0
    %p88 = por %p86, %p87
    %p89 = scmp.le.s32.totalorder 1, %s8
    %p90 = scmp.lt.s32.totalorder %s8, 3
    %p91 = pnand %p89, %p90
    %p92 = pneg %p91
    // Predicated region
    $region9: #{sem_ch_graph_conv.1} parent=5 // pred_check
      _
    $region10: #{sem_ch_graph_conv.1} parent=5 // pred_check_branch
      %94 = sbr.rel (%p91) target = $region12
    $region11: #{sem_ch_graph_conv.1} parent=5 // pred_region
      %s95 = ssub.s32 %s8, 1
      // Predicated region
      $region13: #{sem_ch_graph_conv.1} parent=11 // pred_check
        %p96 = pneg %p55
      $region14: #{sem_ch_graph_conv.1} parent=11 // pred_check_branch
        %98 = sbr.rel (%p96) target = $region16
      $region15: #{sem_ch_graph_conv.1} parent=11 // pred_region
        _
      $region16: #{sem_ch_graph_conv.1} parent=11 // pred_fallthru
        _
    $region12: #{sem_ch_graph_conv.1} parent=5 // pred_fallthru
      _
    %p99 = scmp.lt.s32.totalorder %s8, 2
    // Predicated region
    $region17: #{sem_ch_graph_conv.1} parent=5 // pred_check
      %p100 = pneg %p99
    $region18: #{sem_ch_graph_conv.1} parent=5 // pred_check_branch
      %102 = sbr.rel (%p100) target = $region20
    $region19: #{sem_ch_graph_conv.1} parent=5 // pred_region
      // Predicated region
      $region21: #{sem_ch_graph_conv.1} parent=19 // pred_check
        %p103 = pneg %p28
      $region22: #{sem_ch_graph_conv.1} parent=19 // pred_check_branch
        %105 = sbr.rel (%p103) target = $region24
      $region23: #{sem_ch_graph_conv.1} parent=19 // pred_region
        %p106 = scmp.lt.s32.totalorder %s8, 1
        %s107 = scalar_select %p106, %s8, 1
        %s108 = smul.addr %s107, 4
        %s109 = smul.addr %s108, 8
        %s110 = scalar_lea.vmem %s0, %s109
      $region24: #{sem_ch_graph_conv.1} parent=19 // pred_fallthru
        _
    $region20: #{sem_ch_graph_conv.1} parent=5 // pred_fallthru
      _
    %p111 = scmp.le.s32.totalorder 1, %s8
    %p112 = scmp.lt.s32.totalorder %s8, 3
    %p113 = pnand %p111, %p112
    %p114 = pneg %p113
    // Predicated region
    $region25: #{sem_ch_graph_conv.1} parent=5 // pred_check
      _
    $region26: #{sem_ch_graph_conv.1} parent=5 // pred_check_branch
      %116 = sbr.rel (%p113) target = $region28
    $region27: #{sem_ch_graph_conv.1} parent=5 // pred_region
      %s117 = ssub.s32 %s8, 1
      %p118 = scmp.lt.s32.totalorder %s13, 1
      %s119 = scalar_select %p118, %s13, 1
      %s120 = smul.addr %s119, 4
      %s121 = smul.addr %s120, 8
      %s122 = scalar_lea.vmem %s0, %s121
      %p123 = pneg %p34
      %p124 = pneg %p31
      %p125 = pneg %p55
      %p126 = pneg %p52
      %p127 = pneg %p81
      %p128 = pneg %p78
      %p129 = scmp.lt.s32.totalorder %s13, 1
      %s130 = scalar_select %p129, %s13, 1
      %s131 = smul.addr %s130, 4
      %s132 = smul.addr %s131, 8
      %s133 = scalar_lea.vmem %s2, %s132
      %p134 = scmp.lt.s32.totalorder %s13, 1
      %s135 = scalar_select %p134, %s13, 1
      %s136 = smul.addr %s135, 4
      %s137 = smul.addr %s136, 8
      %s138 = scalar_lea.vmem %s0, %s137
      %p139 = scmp.lt.s32.totalorder %s13, 1
      %s140 = scalar_select %p139, %s13, 1
      %s141 = smul.addr %s140, 4
      %s142 = smul.addr %s141, 8
      %s143 = scalar_lea.vmem %s2, %s142
      %v144 = vld [vmem:[%s138] sm:$0xff]
      %v145 = vld [vmem:[%s138 + $0x8] sm:$0xff]
      %v146 = vld [vmem:[%s138 + $0x10] sm:$0xff]
      %v147 = vld [vmem:[%s138 + $0x18] sm:$0xff]
      %v148 = vpack.c.bf16 %v144, %v144
      %v149 = vpack.c.bf16 %v145, %v145
      %v150 = vpack.c.bf16 %v146, %v146
      %v151 = vpack.c.bf16 %v147, %v147
      %v152 = vld [vmem:[%s1] sm:$0xff]
      %v153 = vld [vmem:[%s1 + $0x8] sm:$0xff]
      %v154 = vld [vmem:[%s1 + $0x10] sm:$0xff]
      %v155 = vld [vmem:[%s1 + $0x18] sm:$0xff]
      %v156 = vld [vmem:[%s1 + $0x20] sm:$0xff]
      %v157 = vld [vmem:[%s1 + $0x28] sm:$0xff]
      %v158 = vld [vmem:[%s1 + $0x30] sm:$0xff]
      %v159 = vld [vmem:[%s1 + $0x38] sm:$0xff]
      %v160 = vld [vmem:[%s1 + $0x40] sm:$0xff]
      %v161 = vld [vmem:[%s1 + $0x48] sm:$0xff]
      %v162 = vld [vmem:[%s1 + $0x50] sm:$0xff]
      %v163 = vld [vmem:[%s1 + $0x58] sm:$0xff]
      %v164 = vld [vmem:[%s1 + $0x60] sm:$0xff]
      %v165 = vld [vmem:[%s1 + $0x68] sm:$0xff]
      %v166 = vld [vmem:[%s1 + $0x70] sm:$0xff]
      %v167 = vld [vmem:[%s1 + $0x78] sm:$0xff]
      %v168 = vld [vmem:[%s1 + $0x80] sm:$0xff]
      %v169 = vld [vmem:[%s1 + $0x88] sm:$0xff]
      %v170 = vld [vmem:[%s1 + $0x90] sm:$0xff]
      %v171 = vld [vmem:[%s1 + $0x98] sm:$0xff]
      %v172 = vld [vmem:[%s1 + $0xa0] sm:$0xff]
      %v173 = vld [vmem:[%s1 + $0xa8] sm:$0xff]
      %v174 = vld [vmem:[%s1 + $0xb0] sm:$0xff]
      %v175 = vld [vmem:[%s1 + $0xb8] sm:$0xff]
      %v176 = vld [vmem:[%s1 + $0xc0] sm:$0xff]
      %v177 = vld [vmem:[%s1 + $0xc8] sm:$0xff]
      %v178 = vld [vmem:[%s1 + $0xd0] sm:$0xff]
      %v179 = vld [vmem:[%s1 + $0xd8] sm:$0xff]
      %v180 = vld [vmem:[%s1 + $0xe0] sm:$0xff]
      %v181 = vld [vmem:[%s1 + $0xe8] sm:$0xff]
      %v182 = vld [vmem:[%s1 + $0xf0] sm:$0xff]
      %v183 = vld [vmem:[%s1 + $0xf8] sm:$0xff]
      %v184 = vld [vmem:[%s1 + $0x100] sm:$0xff]
      %v185 = vld [vmem:[%s1 + $0x108] sm:$0xff]
      %v186 = vld [vmem:[%s1 + $0x110] sm:$0xff]
      %v187 = vld [vmem:[%s1 + $0x118] sm:$0xff]
      %v188 = vld [vmem:[%s1 + $0x120] sm:$0xff]
      %v189 = vld [vmem:[%s1 + $0x128] sm:$0xff]
      %v190 = vld [vmem:[%s1 + $0x130] sm:$0xff]
      %v191 = vld [vmem:[%s1 + $0x138] sm:$0xff]
      %v192 = vld [vmem:[%s1 + $0x140] sm:$0xff]
      %v193 = vld [vmem:[%s1 + $0x148] sm:$0xff]
      %v194 = vld [vmem:[%s1 + $0x150] sm:$0xff]
      %v195 = vld [vmem:[%s1 + $0x158] sm:$0xff]
      %v196 = vld [vmem:[%s1 + $0x160] sm:$0xff]
      %v197 = vld [vmem:[%s1 + $0x168] sm:$0xff]
      %v198 = vld [vmem:[%s1 + $0x170] sm:$0xff]
      %v199 = vld [vmem:[%s1 + $0x178] sm:$0xff]
      %v200 = vld [vmem:[%s1 + $0x180] sm:$0xff]
      %v201 = vld [vmem:[%s1 + $0x188] sm:$0xff]
      %v202 = vld [vmem:[%s1 + $0x190] sm:$0xff]
      %v203 = vld [vmem:[%s1 + $0x198] sm:$0xff]
      %v204 = vld [vmem:[%s1 + $0x1a0] sm:$0xff]
      %v205 = vld [vmem:[%s1 + $0x1a8] sm:$0xff]
      %v206 = vld [vmem:[%s1 + $0x1b0] sm:$0xff]
      %v207 = vld [vmem:[%s1 + $0x1b8] sm:$0xff]
      %v208 = vld [vmem:[%s1 + $0x1c0] sm:$0xff]
      %v209 = vld [vmem:[%s1 + $0x1c8] sm:$0xff]
      %v210 = vld [vmem:[%s1 + $0x1d0] sm:$0xff]
      %v211 = vld [vmem:[%s1 + $0x1d8] sm:$0xff]
      %v212 = vld [vmem:[%s1 + $0x1e0] sm:$0xff]
      %v213 = vld [vmem:[%s1 + $0x1e8] sm:$0xff]
      %v214 = vld [vmem:[%s1 + $0x1f0] sm:$0xff]
      %v215 = vld [vmem:[%s1 + $0x1f8] sm:$0xff]
      %v216 = vld [vmem:[%s1 + $0x200] sm:$0xff]
      %v217 = vld [vmem:[%s1 + $0x208] sm:$0xff]
      %v218 = vld [vmem:[%s1 + $0x210] sm:$0xff]
      %v219 = vld [vmem:[%s1 + $0x218] sm:$0xff]
      %v220 = vld [vmem:[%s1 + $0x220] sm:$0xff]
      %v221 = vld [vmem:[%s1 + $0x228] sm:$0xff]
      %v222 = vld [vmem:[%s1 + $0x230] sm:$0xff]
      %v223 = vld [vmem:[%s1 + $0x238] sm:$0xff]
      %v224 = vld [vmem:[%s1 + $0x240] sm:$0xff]
      %v225 = vld [vmem:[%s1 + $0x248] sm:$0xff]
      %v226 = vld [vmem:[%s1 + $0x250] sm:$0xff]
      %v227 = vld [vmem:[%s1 + $0x258] sm:$0xff]
      %v228 = vld [vmem:[%s1 + $0x260] sm:$0xff]
      %v229 = vld [vmem:[%s1 + $0x268] sm:$0xff]
      %v230 = vld [vmem:[%s1 + $0x270] sm:$0xff]
      %v231 = vld [vmem:[%s1 + $0x278] sm:$0xff]
      %v232 = vld [vmem:[%s1 + $0x280] sm:$0xff]
      %v233 = vld [vmem:[%s1 + $0x288] sm:$0xff]
      %v234 = vld [vmem:[%s1 + $0x290] sm:$0xff]
      %v235 = vld [vmem:[%s1 + $0x298] sm:$0xff]
      %v236 = vld [vmem:[%s1 + $0x2a0] sm:$0xff]
      %v237 = vld [vmem:[%s1 + $0x2a8] sm:$0xff]
      %v238 = vld [vmem:[%s1 + $0x2b0] sm:$0xff]
      %v239 = vld [vmem:[%s1 + $0x2b8] sm:$0xff]
      %v240 = vld [vmem:[%s1 + $0x2c0] sm:$0xff]
      %v241 = vld [vmem:[%s1 + $0x2c8] sm:$0xff]
      %v242 = vld [vmem:[%s1 + $0x2d0] sm:$0xff]
      %v243 = vld [vmem:[%s1 + $0x2d8] sm:$0xff]
      %v244 = vld [vmem:[%s1 + $0x2e0] sm:$0xff]
      %v245 = vld [vmem:[%s1 + $0x2e8] sm:$0xff]
      %v246 = vld [vmem:[%s1 + $0x2f0] sm:$0xff]
      %v247 = vld [vmem:[%s1 + $0x2f8] sm:$0xff]
      %v248 = vld [vmem:[%s1 + $0x300] sm:$0xff]
      %v249 = vld [vmem:[%s1 + $0x308] sm:$0xff]
      %v250 = vld [vmem:[%s1 + $0x310] sm:$0xff]
      %v251 = vld [vmem:[%s1 + $0x318] sm:$0xff]
      %v252 = vld [vmem:[%s1 + $0x320] sm:$0xff]
      %v253 = vld [vmem:[%s1 + $0x328] sm:$0xff]
      %v254 = vld [vmem:[%s1 + $0x330] sm:$0xff]
      %v255 = vld [vmem:[%s1 + $0x338] sm:$0xff]
      %v256 = vld [vmem:[%s1 + $0x340] sm:$0xff]
      %v257 = vld [vmem:[%s1 + $0x348] sm:$0xff]
      %v258 = vld [vmem:[%s1 + $0x350] sm:$0xff]
      %v259 = vld [vmem:[%s1 + $0x358] sm:$0xff]
      %v260 = vld [vmem:[%s1 + $0x360] sm:$0xff]
      %v261 = vld [vmem:[%s1 + $0x368] sm:$0xff]
      %v262 = vld [vmem:[%s1 + $0x370] sm:$0xff]
      %v263 = vld [vmem:[%s1 + $0x378] sm:$0xff]
      %v264 = vld [vmem:[%s1 + $0x380] sm:$0xff]
      %v265 = vld [vmem:[%s1 + $0x388] sm:$0xff]
      %v266 = vld [vmem:[%s1 + $0x390] sm:$0xff]
      %v267 = vld [vmem:[%s1 + $0x398] sm:$0xff]
      %v268 = vld [vmem:[%s1 + $0x3a0] sm:$0xff]
      %v269 = vld [vmem:[%s1 + $0x3a8] sm:$0xff]
      %v270 = vld [vmem:[%s1 + $0x3b0] sm:$0xff]
      %v271 = vld [vmem:[%s1 + $0x3b8] sm:$0xff]
      %v272 = vld [vmem:[%s1 + $0x3c0] sm:$0xff]
      %v273 = vld [vmem:[%s1 + $0x3c8] sm:$0xff]
      %v274 = vld [vmem:[%s1 + $0x3d0] sm:$0xff]
      %v275 = vld [vmem:[%s1 + $0x3d8] sm:$0xff]
      %v276 = vld [vmem:[%s1 + $0x3e0] sm:$0xff]
      %v277 = vld [vmem:[%s1 + $0x3e8] sm:$0xff]
      %v278 = vld [vmem:[%s1 + $0x3f0] sm:$0xff]
      %v279 = vld [vmem:[%s1 + $0x3f8] sm:$0xff]
      %v408 = vunpack.c.l.b16 %v152
      %v409 = vunpack.c.h.b16 %v152
      %v410 = vunpack.c.l.b16 %v153
      %v411 = vunpack.c.h.b16 %v153
      %v412 = vunpack.c.l.b16 %v154
      %v413 = vunpack.c.h.b16 %v154
      %v414 = vunpack.c.l.b16 %v155
      %v415 = vunpack.c.h.b16 %v155
      %v416 = vunpack.c.l.b16 %v156
      %v417 = vunpack.c.h.b16 %v156
      %v418 = vunpack.c.l.b16 %v157
      %v419 = vunpack.c.h.b16 %v157
      %v420 = vunpack.c.l.b16 %v158
      %v421 = vunpack.c.h.b16 %v158
      %v422 = vunpack.c.l.b16 %v159
      %v423 = vunpack.c.h.b16 %v159
      %v424 = vunpack.c.l.b16 %v160
      %v425 = vunpack.c.h.b16 %v160
      %v426 = vunpack.c.l.b16 %v161
      %v427 = vunpack.c.h.b16 %v161
      %v428 = vunpack.c.l.b16 %v162
      %v429 = vunpack.c.h.b16 %v162
      %v430 = vunpack.c.l.b16 %v163
      %v431 = vunpack.c.h.b16 %v163
      %v432 = vunpack.c.l.b16 %v164
      %v433 = vunpack.c.h.b16 %v164
      %v434 = vunpack.c.l.b16 %v165
      %v435 = vunpack.c.h.b16 %v165
      %v436 = vunpack.c.l.b16 %v166
      %v437 = vunpack.c.h.b16 %v166
      %v438 = vunpack.c.l.b16 %v167
      %v439 = vunpack.c.h.b16 %v167
      %v440 = vunpack.c.l.b16 %v168
      %v441 = vunpack.c.h.b16 %v168
      %v442 = vunpack.c.l.b16 %v169
      %v443 = vunpack.c.h.b16 %v169
      %v444 = vunpack.c.l.b16 %v170
      %v445 = vunpack.c.h.b16 %v170
      %v446 = vunpack.c.l.b16 %v171
      %v447 = vunpack.c.h.b16 %v171
      %v448 = vunpack.c.l.b16 %v172
      %v449 = vunpack.c.h.b16 %v172
      %v450 = vunpack.c.l.b16 %v173
      %v451 = vunpack.c.h.b16 %v173
      %v452 = vunpack.c.l.b16 %v174
      %v453 = vunpack.c.h.b16 %v174
      %v454 = vunpack.c.l.b16 %v175
      %v455 = vunpack.c.h.b16 %v175
      %v456 = vunpack.c.l.b16 %v176
      %v457 = vunpack.c.h.b16 %v176
      %v458 = vunpack.c.l.b16 %v177
      %v459 = vunpack.c.h.b16 %v177
      %v460 = vunpack.c.l.b16 %v178
      %v461 = vunpack.c.h.b16 %v178
      %v462 = vunpack.c.l.b16 %v179
      %v463 = vunpack.c.h.b16 %v179
      %v464 = vunpack.c.l.b16 %v180
      %v465 = vunpack.c.h.b16 %v180
      %v466 = vunpack.c.l.b16 %v181
      %v467 = vunpack.c.h.b16 %v181
      %v468 = vunpack.c.l.b16 %v182
      %v469 = vunpack.c.h.b16 %v182
      %v470 = vunpack.c.l.b16 %v183
      %v471 = vunpack.c.h.b16 %v183
      %v472 = vunpack.c.l.b16 %v184
      %v473 = vunpack.c.h.b16 %v184
      %v474 = vunpack.c.l.b16 %v185
      %v475 = vunpack.c.h.b16 %v185
      %v476 = vunpack.c.l.b16 %v186
      %v477 = vunpack.c.h.b16 %v186
      %v478 = vunpack.c.l.b16 %v187
      %v479 = vunpack.c.h.b16 %v187
      %v480 = vunpack.c.l.b16 %v188
      %v481 = vunpack.c.h.b16 %v188
      %v482 = vunpack.c.l.b16 %v189
      %v483 = vunpack.c.h.b16 %v189
      %v484 = vunpack.c.l.b16 %v190
      %v485 = vunpack.c.h.b16 %v190
      %v486 = vunpack.c.l.b16 %v191
      %v487 = vunpack.c.h.b16 %v191
      %v488 = vunpack.c.l.b16 %v192
      %v489 = vunpack.c.h.b16 %v192
      %v490 = vunpack.c.l.b16 %v193
      %v491 = vunpack.c.h.b16 %v193
      %v492 = vunpack.c.l.b16 %v194
      %v493 = vunpack.c.h.b16 %v194
      %v494 = vunpack.c.l.b16 %v195
      %v495 = vunpack.c.h.b16 %v195
      %v496 = vunpack.c.l.b16 %v196
      %v497 = vunpack.c.h.b16 %v196
      %v498 = vunpack.c.l.b16 %v197
      %v499 = vunpack.c.h.b16 %v197
      %v500 = vunpack.c.l.b16 %v198
      %v501 = vunpack.c.h.b16 %v198
      %v502 = vunpack.c.l.b16 %v199
      %v503 = vunpack.c.h.b16 %v199
      %v504 = vunpack.c.l.b16 %v200
      %v505 = vunpack.c.h.b16 %v200
      %v506 = vunpack.c.l.b16 %v201
      %v507 = vunpack.c.h.b16 %v201
      %v508 = vunpack.c.l.b16 %v202
      %v509 = vunpack.c.h.b16 %v202
      %v510 = vunpack.c.l.b16 %v203
      %v511 = vunpack.c.h.b16 %v203
      %v512 = vunpack.c.l.b16 %v204
      %v513 = vunpack.c.h.b16 %v204
      %v514 = vunpack.c.l.b16 %v205
      %v515 = vunpack.c.h.b16 %v205
      %v516 = vunpack.c.l.b16 %v206
      %v517 = vunpack.c.h.b16 %v206
      %v518 = vunpack.c.l.b16 %v207
      %v519 = vunpack.c.h.b16 %v207
      %v520 = vunpack.c.l.b16 %v208
      %v521 = vunpack.c.h.b16 %v208
      %v522 = vunpack.c.l.b16 %v209
      %v523 = vunpack.c.h.b16 %v209
      %v524 = vunpack.c.l.b16 %v210
      %v525 = vunpack.c.h.b16 %v210
      %v526 = vunpack.c.l.b16 %v211
      %v527 = vunpack.c.h.b16 %v211
      %v528 = vunpack.c.l.b16 %v212
      %v529 = vunpack.c.h.b16 %v212
      %v530 = vunpack.c.l.b16 %v213
      %v531 = vunpack.c.h.b16 %v213
      %v532 = vunpack.c.l.b16 %v214
      %v533 = vunpack.c.h.b16 %v214
      %v534 = vunpack.c.l.b16 %v215
      %v535 = vunpack.c.h.b16 %v215
      %v536 = vunpack.c.l.b16 %v216
      %v537 = vunpack.c.h.b16 %v216
      %v538 = vunpack.c.l.b16 %v217
      %v539 = vunpack.c.h.b16 %v217
      %v540 = vunpack.c.l.b16 %v218
      %v541 = vunpack.c.h.b16 %v218
      %v542 = vunpack.c.l.b16 %v219
      %v543 = vunpack.c.h.b16 %v219
      %v544 = vunpack.c.l.b16 %v220
      %v545 = vunpack.c.h.b16 %v220
      %v546 = vunpack.c.l.b16 %v221
      %v547 = vunpack.c.h.b16 %v221
      %v548 = vunpack.c.l.b16 %v222
      %v549 = vunpack.c.h.b16 %v222
      %v550 = vunpack.c.l.b16 %v223
      %v551 = vunpack.c.h.b16 %v223
      %v552 = vunpack.c.l.b16 %v224
      %v553 = vunpack.c.h.b16 %v224
      %v554 = vunpack.c.l.b16 %v225
      %v555 = vunpack.c.h.b16 %v225
      %v556 = vunpack.c.l.b16 %v226
      %v557 = vunpack.c.h.b16 %v226
      %v558 = vunpack.c.l.b16 %v227
      %v559 = vunpack.c.h.b16 %v227
      %v560 = vunpack.c.l.b16 %v228
      %v561 = vunpack.c.h.b16 %v228
      %v562 = vunpack.c.l.b16 %v229
      %v563 = vunpack.c.h.b16 %v229
      %v564 = vunpack.c.l.b16 %v230
      %v565 = vunpack.c.h.b16 %v230
      %v566 = vunpack.c.l.b16 %v231
      %v567 = vunpack.c.h.b16 %v231
      %v568 = vunpack.c.l.b16 %v232
      %v569 = vunpack.c.h.b16 %v232
      %v570 = vunpack.c.l.b16 %v233
      %v571 = vunpack.c.h.b16 %v233
      %v572 = vunpack.c.l.b16 %v234
      %v573 = vunpack.c.h.b16 %v234
      %v574 = vunpack.c.l.b16 %v235
      %v575 = vunpack.c.h.b16 %v235
      %v576 = vunpack.c.l.b16 %v236
      %v577 = vunpack.c.h.b16 %v236
      %v578 = vunpack.c.l.b16 %v237
      %v579 = vunpack.c.h.b16 %v237
      %v580 = vunpack.c.l.b16 %v238
      %v581 = vunpack.c.h.b16 %v238
      %v582 = vunpack.c.l.b16 %v239
      %v583 = vunpack.c.h.b16 %v239
      %v584 = vunpack.c.l.b16 %v240
      %v585 = vunpack.c.h.b16 %v240
      %v586 = vunpack.c.l.b16 %v241
      %v587 = vunpack.c.h.b16 %v241
      %v588 = vunpack.c.l.b16 %v242
      %v589 = vunpack.c.h.b16 %v242
      %v590 = vunpack.c.l.b16 %v243
      %v591 = vunpack.c.h.b16 %v243
      %v592 = vunpack.c.l.b16 %v244
      %v593 = vunpack.c.h.b16 %v244
      %v594 = vunpack.c.l.b16 %v245
      %v595 = vunpack.c.h.b16 %v245
      %v596 = vunpack.c.l.b16 %v246
      %v597 = vunpack.c.h.b16 %v246
      %v598 = vunpack.c.l.b16 %v247
      %v599 = vunpack.c.h.b16 %v247
      %v600 = vunpack.c.l.b16 %v248
      %v601 = vunpack.c.h.b16 %v248
      %v602 = vunpack.c.l.b16 %v249
      %v603 = vunpack.c.h.b16 %v249
      %v604 = vunpack.c.l.b16 %v250
      %v605 = vunpack.c.h.b16 %v250
      %v606 = vunpack.c.l.b16 %v251
      %v607 = vunpack.c.h.b16 %v251
      %v608 = vunpack.c.l.b16 %v252
      %v609 = vunpack.c.h.b16 %v252
      %v610 = vunpack.c.l.b16 %v253
      %v611 = vunpack.c.h.b16 %v253
      %v612 = vunpack.c.l.b16 %v254
      %v613 = vunpack.c.h.b16 %v254
      %v614 = vunpack.c.l.b16 %v255
      %v615 = vunpack.c.h.b16 %v255
      %v616 = vunpack.c.l.b16 %v256
      %v617 = vunpack.c.h.b16 %v256
      %v618 = vunpack.c.l.b16 %v257
      %v619 = vunpack.c.h.b16 %v257
      %v620 = vunpack.c.l.b16 %v258
      %v621 = vunpack.c.h.b16 %v258
      %v622 = vunpack.c.l.b16 %v259
      %v623 = vunpack.c.h.b16 %v259
      %v624 = vunpack.c.l.b16 %v260
      %v625 = vunpack.c.h.b16 %v260
      %v626 = vunpack.c.l.b16 %v261
      %v627 = vunpack.c.h.b16 %v261
      %v628 = vunpack.c.l.b16 %v262
      %v629 = vunpack.c.h.b16 %v262
      %v630 = vunpack.c.l.b16 %v263
      %v631 = vunpack.c.h.b16 %v263
      %v632 = vunpack.c.l.b16 %v264
      %v633 = vunpack.c.h.b16 %v264
      %v634 = vunpack.c.l.b16 %v265
      %v635 = vunpack.c.h.b16 %v265
      %v636 = vunpack.c.l.b16 %v266
      %v637 = vunpack.c.h.b16 %v266
      %v638 = vunpack.c.l.b16 %v267
      %v639 = vunpack.c.h.b16 %v267
      %v640 = vunpack.c.l.b16 %v268
      %v641 = vunpack.c.h.b16 %v268
      %v642 = vunpack.c.l.b16 %v269
      %v643 = vunpack.c.h.b16 %v269
      %v644 = vunpack.c.l.b16 %v270
      %v645 = vunpack.c.h.b16 %v270
      %v646 = vunpack.c.l.b16 %v271
      %v647 = vunpack.c.h.b16 %v271
      %v648 = vunpack.c.l.b16 %v272
      %v649 = vunpack.c.h.b16 %v272
      %v650 = vunpack.c.l.b16 %v273
      %v651 = vunpack.c.h.b16 %v273
      %v652 = vunpack.c.l.b16 %v274
      %v653 = vunpack.c.h.b16 %v274
      %v654 = vunpack.c.l.b16 %v275
      %v655 = vunpack.c.h.b16 %v275
      %v656 = vunpack.c.l.b16 %v276
      %v657 = vunpack.c.h.b16 %v276
      %v658 = vunpack.c.l.b16 %v277
      %v659 = vunpack.c.h.b16 %v277
      %v660 = vunpack.c.l.b16 %v278
      %v661 = vunpack.c.h.b16 %v278
      %v662 = vunpack.c.l.b16 %v279
      %v663 = vunpack.c.h.b16 %v279
      %v664 = vpack.c.b16 %v412, %v408
      %v665 = vpack.c.b16 %v413, %v409
      %v666 = vpack.c.b16 %v414, %v410
      %v667 = vpack.c.b16 %v415, %v411
      %v668 = vpack.c.b16 %v420, %v416
      %v669 = vpack.c.b16 %v421, %v417
      %v670 = vpack.c.b16 %v422, %v418
      %v671 = vpack.c.b16 %v423, %v419
      %v672 = vpack.c.b16 %v428, %v424
      %v673 = vpack.c.b16 %v429, %v425
      %v674 = vpack.c.b16 %v430, %v426
      %v675 = vpack.c.b16 %v431, %v427
      %v676 = vpack.c.b16 %v436, %v432
      %v677 = vpack.c.b16 %v437, %v433
      %v678 = vpack.c.b16 %v438, %v434
      %v679 = vpack.c.b16 %v439, %v435
      %v680 = vpack.c.b16 %v444, %v440
      %v681 = vpack.c.b16 %v445, %v441
      %v682 = vpack.c.b16 %v446, %v442
      %v683 = vpack.c.b16 %v447, %v443
      %v684 = vpack.c.b16 %v452, %v448
      %v685 = vpack.c.b16 %v453, %v449
      %v686 = vpack.c.b16 %v454, %v450
      %v687 = vpack.c.b16 %v455, %v451
      %v688 = vpack.c.b16 %v460, %v456
      %v689 = vpack.c.b16 %v461, %v457
      %v690 = vpack.c.b16 %v462, %v458
      %v691 = vpack.c.b16 %v463, %v459
      %v692 = vpack.c.b16 %v468, %v464
      %v693 = vpack.c.b16 %v469, %v465
      %v694 = vpack.c.b16 %v470, %v466
      %v695 = vpack.c.b16 %v471, %v467
      %v696 = vpack.c.b16 %v476, %v472
      %v697 = vpack.c.b16 %v477, %v473
      %v698 = vpack.c.b16 %v478, %v474
      %v699 = vpack.c.b16 %v479, %v475
      %v700 = vpack.c.b16 %v484, %v480
      %v701 = vpack.c.b16 %v485, %v481
      %v702 = vpack.c.b16 %v486, %v482
      %v703 = vpack.c.b16 %v487, %v483
      %v704 = vpack.c.b16 %v492, %v488
      %v705 = vpack.c.b16 %v493, %v489
      %v706 = vpack.c.b16 %v494, %v490
      %v707 = vpack.c.b16 %v495, %v491
      %v708 = vpack.c.b16 %v500, %v496
      %v709 = vpack.c.b16 %v501, %v497
      %v710 = vpack.c.b16 %v502, %v498
      %v711 = vpack.c.b16 %v503, %v499
      %v712 = vpack.c.b16 %v508, %v504
      %v713 = vpack.c.b16 %v509, %v505
      %v714 = vpack.c.b16 %v510, %v506
      %v715 = vpack.c.b16 %v511, %v507
      %v716 = vpack.c.b16 %v516, %v512
      %v717 = vpack.c.b16 %v517, %v513
      %v718 = vpack.c.b16 %v518, %v514
      %v719 = vpack.c.b16 %v519, %v515
      %v720 = vpack.c.b16 %v524, %v520
      %v721 = vpack.c.b16 %v525, %v521
      %v722 = vpack.c.b16 %v526, %v522
      %v723 = vpack.c.b16 %v527, %v523
      %v724 = vpack.c.b16 %v532, %v528
      %v725 = vpack.c.b16 %v533, %v529
      %v726 = vpack.c.b16 %v534, %v530
      %v727 = vpack.c.b16 %v535, %v531
      %v728 = vpack.c.b16 %v540, %v536
      %v729 = vpack.c.b16 %v541, %v537
      %v730 = vpack.c.b16 %v542, %v538
      %v731 = vpack.c.b16 %v543, %v539
      %v732 = vpack.c.b16 %v548, %v544
      %v733 = vpack.c.b16 %v549, %v545
      %v734 = vpack.c.b16 %v550, %v546
      %v735 = vpack.c.b16 %v551, %v547
      %v736 = vpack.c.b16 %v556, %v552
      %v737 = vpack.c.b16 %v557, %v553
      %v738 = vpack.c.b16 %v558, %v554
      %v739 = vpack.c.b16 %v559, %v555
      %v740 = vpack.c.b16 %v564, %v560
      %v741 = vpack.c.b16 %v565, %v561
      %v742 = vpack.c.b16 %v566, %v562
      %v743 = vpack.c.b16 %v567, %v563
      %v744 = vpack.c.b16 %v572, %v568
      %v745 = vpack.c.b16 %v573, %v569
      %v746 = vpack.c.b16 %v574, %v570
      %v747 = vpack.c.b16 %v575, %v571
      %v748 = vpack.c.b16 %v580, %v576
      %v749 = vpack.c.b16 %v581, %v577
      %v750 = vpack.c.b16 %v582, %v578
      %v751 = vpack.c.b16 %v583, %v579
      %v752 = vpack.c.b16 %v588, %v584
      %v753 = vpack.c.b16 %v589, %v585
      %v754 = vpack.c.b16 %v590, %v586
      %v755 = vpack.c.b16 %v591, %v587
      %v756 = vpack.c.b16 %v596, %v592
      %v757 = vpack.c.b16 %v597, %v593
      %v758 = vpack.c.b16 %v598, %v594
      %v759 = vpack.c.b16 %v599, %v595
      %v760 = vpack.c.b16 %v604, %v600
      %v761 = vpack.c.b16 %v605, %v601
      %v762 = vpack.c.b16 %v606, %v602
      %v763 = vpack.c.b16 %v607, %v603
      %v764 = vpack.c.b16 %v612, %v608
      %v765 = vpack.c.b16 %v613, %v609
      %v766 = vpack.c.b16 %v614, %v610
      %v767 = vpack.c.b16 %v615, %v611
      %v768 = vpack.c.b16 %v620, %v616
      %v769 = vpack.c.b16 %v621, %v617
      %v770 = vpack.c.b16 %v622, %v618
      %v771 = vpack.c.b16 %v623, %v619
      %v772 = vpack.c.b16 %v628, %v624
      %v773 = vpack.c.b16 %v629, %v625
      %v774 = vpack.c.b16 %v630, %v626
      %v775 = vpack.c.b16 %v631, %v627
      %v776 = vpack.c.b16 %v636, %v632
      %v777 = vpack.c.b16 %v637, %v633
      %v778 = vpack.c.b16 %v638, %v634
      %v779 = vpack.c.b16 %v639, %v635
      %v780 = vpack.c.b16 %v644, %v640
      %v781 = vpack.c.b16 %v645, %v641
      %v782 = vpack.c.b16 %v646, %v642
      %v783 = vpack.c.b16 %v647, %v643
      %v784 = vpack.c.b16 %v652, %v648
      %v785 = vpack.c.b16 %v653, %v649
      %v786 = vpack.c.b16 %v654, %v650
      %v787 = vpack.c.b16 %v655, %v651
      %v788 = vpack.c.b16 %v660, %v656
      %v789 = vpack.c.b16 %v661, %v657
      %v790 = vpack.c.b16 %v662, %v658
      %v791 = vpack.c.b16 %v663, %v659
      %920 = vmatpush.bf16.msra.mxu0 %v692
      %921 = vmatpush.bf16.msra.mxu0 %v688
      %922 = vmatpush.bf16.msra.mxu0 %v684
      %923 = vmatpush.bf16.msra.mxu0 %v680
      %924 = vmatpush.bf16.msra.mxu0 %v676
      %925 = vmatpush.bf16.msra.mxu0 %v672
      %926 = vmatpush.bf16.msra.mxu0 %v668
      %927 = vmatpush.bf16.msra.mxu0 %v664
      %928 = vmatmul.bf16.gmra.mxu0 %v148
      %v929 = vpop.f32.mrf.mxu0
      %v930 = vadd.f32 0.0, %v929
      %v931 = vpop.f32.mrf.mxu0
      %932 = vdwg.mxu0
      %933 = vmatpush.bf16.msra.mxu0 %v724
      %934 = vmatpush.bf16.msra.mxu0 %v720
      %935 = vmatpush.bf16.msra.mxu0 %v716
      %936 = vmatpush.bf16.msra.mxu0 %v712
      %937 = vmatpush.bf16.msra.mxu0 %v708
      %938 = vmatpush.bf16.msra.mxu0 %v704
      %939 = vmatpush.bf16.msra.mxu0 %v700
      %940 = vmatpush.bf16.msra.mxu0 %v696
      %941 = vmatmul.bf16.gmra.mxu0 %v149
      %v942 = vpop.f32.mrf.mxu0
      %v943 = vadd.f32 %v930, %v942
      %v944 = vpop.f32.mrf.mxu0
      %945 = vdwg.mxu0
      %946 = vmatpush.bf16.msra.mxu0 %v756
      %947 = vmatpush.bf16.msra.mxu0 %v752
      %948 = vmatpush.bf16.msra.mxu0 %v748
      %949 = vmatpush.bf16.msra.mxu0 %v744
      %950 = vmatpush.bf16.msra.mxu0 %v740
      %951 = vmatpush.bf16.msra.mxu0 %v736
      %952 = vmatpush.bf16.msra.mxu0 %v732
      %953 = vmatpush.bf16.msra.mxu0 %v728
      %954 = vmatmul.bf16.gmra.mxu0 %v150
      %v955 = vpop.f32.mrf.mxu0
      %v956 = vadd.f32 %v943, %v955
      %v957 = vpop.f32.mrf.mxu0
      %958 = vdwg.mxu0
      %959 = vmatpush.bf16.msra.mxu0 %v788
      %960 = vmatpush.bf16.msra.mxu0 %v784
      %961 = vmatpush.bf16.msra.mxu0 %v780
      %962 = vmatpush.bf16.msra.mxu0 %v776
      %963 = vmatpush.bf16.msra.mxu0 %v772
      %964 = vmatpush.bf16.msra.mxu0 %v768
      %965 = vmatpush.bf16.msra.mxu0 %v764
      %966 = vmatpush.bf16.msra.mxu0 %v760
      %967 = vmatmul.bf16.gmra.mxu0 %v151
      %v968 = vpop.f32.mrf.mxu0
      %v969 = vadd.f32 %v956, %v968
      %v970 = vpop.f32.mrf.mxu0
      %971 = vdwg.mxu0
      %972 = vmatpush.bf16.msra.mxu0 %v693
      %973 = vmatpush.bf16.msra.mxu0 %v689
      %974 = vmatpush.bf16.msra.mxu0 %v685
      %975 = vmatpush.bf16.msra.mxu0 %v681
      %976 = vmatpush.bf16.msra.mxu0 %v677
      %977 = vmatpush.bf16.msra.mxu0 %v673
      %978 = vmatpush.bf16.msra.mxu0 %v669
      %979 = vmatpush.bf16.msra.mxu0 %v665
      %980 = vmatmul.bf16.gmra.mxu0 %v148
      %v981 = vpop.f32.mrf.mxu0
      %v982 = vadd.f32 0.0, %v981
      %v983 = vpop.f32.mrf.mxu0
      %984 = vdwg.mxu0
      %985 = vmatpush.bf16.msra.mxu0 %v725
      %986 = vmatpush.bf16.msra.mxu0 %v721
      %987 = vmatpush.bf16.msra.mxu0 %v717
      %988 = vmatpush.bf16.msra.mxu0 %v713
      %989 = vmatpush.bf16.msra.mxu0 %v709
      %990 = vmatpush.bf16.msra.mxu0 %v705
      %991 = vmatpush.bf16.msra.mxu0 %v701
      %992 = vmatpush.bf16.msra.mxu0 %v697
      %993 = vmatmul.bf16.gmra.mxu0 %v149
      %v994 = vpop.f32.mrf.mxu0
      %v995 = vadd.f32 %v982, %v994
      %v996 = vpop.f32.mrf.mxu0
      %997 = vdwg.mxu0
      %998 = vmatpush.bf16.msra.mxu0 %v757
      %999 = vmatpush.bf16.msra.mxu0 %v753
      %1000 = vmatpush.bf16.msra.mxu0 %v749
      %1001 = vmatpush.bf16.msra.mxu0 %v745
      %1002 = vmatpush.bf16.msra.mxu0 %v741
      %1003 = vmatpush.bf16.msra.mxu0 %v737
      %1004 = vmatpush.bf16.msra.mxu0 %v733
      %1005 = vmatpush.bf16.msra.mxu0 %v729
      %1006 = vmatmul.bf16.gmra.mxu0 %v150
      %v1007 = vpop.f32.mrf.mxu0
      %v1008 = vadd.f32 %v995, %v1007
      %v1009 = vpop.f32.mrf.mxu0
      %1010 = vdwg.mxu0
      %1011 = vmatpush.bf16.msra.mxu0 %v789
      %1012 = vmatpush.bf16.msra.mxu0 %v785
      %1013 = vmatpush.bf16.msra.mxu0 %v781
      %1014 = vmatpush.bf16.msra.mxu0 %v777
      %1015 = vmatpush.bf16.msra.mxu0 %v773
      %1016 = vmatpush.bf16.msra.mxu0 %v769
      %1017 = vmatpush.bf16.msra.mxu0 %v765
      %1018 = vmatpush.bf16.msra.mxu0 %v761
      %1019 = vmatmul.bf16.gmra.mxu0 %v151
      %v1020 = vpop.f32.mrf.mxu0
      %v1021 = vadd.f32 %v1008, %v1020
      %v1022 = vpop.f32.mrf.mxu0
      %1023 = vdwg.mxu0
      %1024 = vmatpush.bf16.msra.mxu0 %v694
      %1025 = vmatpush.bf16.msra.mxu0 %v690
      %1026 = vmatpush.bf16.msra.mxu0 %v686
      %1027 = vmatpush.bf16.msra.mxu0 %v682
      %1028 = vmatpush.bf16.msra.mxu0 %v678
      %1029 = vmatpush.bf16.msra.mxu0 %v674
      %1030 = vmatpush.bf16.msra.mxu0 %v670
      %1031 = vmatpush.bf16.msra.mxu0 %v666
      %1032 = vmatmul.bf16.gmra.mxu0 %v148
      %v1033 = vpop.f32.mrf.mxu0
      %v1034 = vadd.f32 0.0, %v1033
      %v1035 = vpop.f32.mrf.mxu0
      %1036 = vdwg.mxu0
      %1037 = vmatpush.bf16.msra.mxu0 %v726
      %1038 = vmatpush.bf16.msra.mxu0 %v722
      %1039 = vmatpush.bf16.msra.mxu0 %v718
      %1040 = vmatpush.bf16.msra.mxu0 %v714
      %1041 = vmatpush.bf16.msra.mxu0 %v710
      %1042 = vmatpush.bf16.msra.mxu0 %v706
      %1043 = vmatpush.bf16.msra.mxu0 %v702
      %1044 = vmatpush.bf16.msra.mxu0 %v698
      %1045 = vmatmul.bf16.gmra.mxu0 %v149
      %v1046 = vpop.f32.mrf.mxu0
      %v1047 = vadd.f32 %v1034, %v1046
      %v1048 = vpop.f32.mrf.mxu0
      %1049 = vdwg.mxu0
      %1050 = vmatpush.bf16.msra.mxu0 %v758
      %1051 = vmatpush.bf16.msra.mxu0 %v754
      %1052 = vmatpush.bf16.msra.mxu0 %v750
      %1053 = vmatpush.bf16.msra.mxu0 %v746
      %1054 = vmatpush.bf16.msra.mxu0 %v742
      %1055 = vmatpush.bf16.msra.mxu0 %v738
      %1056 = vmatpush.bf16.msra.mxu0 %v734
      %1057 = vmatpush.bf16.msra.mxu0 %v730
      %1058 = vmatmul.bf16.gmra.mxu0 %v150
      %v1059 = vpop.f32.mrf.mxu0
      %v1060 = vadd.f32 %v1047, %v1059
      %v1061 = vpop.f32.mrf.mxu0
      %1062 = vdwg.mxu0
      %1063 = vmatpush.bf16.msra.mxu0 %v790
      %1064 = vmatpush.bf16.msra.mxu0 %v786
      %1065 = vmatpush.bf16.msra.mxu0 %v782
      %1066 = vmatpush.bf16.msra.mxu0 %v778
      %1067 = vmatpush.bf16.msra.mxu0 %v774
      %1068 = vmatpush.bf16.msra.mxu0 %v770
      %1069 = vmatpush.bf16.msra.mxu0 %v766
      %1070 = vmatpush.bf16.msra.mxu0 %v762
      %1071 = vmatmul.bf16.gmra.mxu0 %v151
      %v1072 = vpop.f32.mrf.mxu0
      %v1073 = vadd.f32 %v1060, %v1072
      %v1074 = vpop.f32.mrf.mxu0
      %1075 = vdwg.mxu0
      %1076 = vmatpush.bf16.msra.mxu0 %v695
      %1077 = vmatpush.bf16.msra.mxu0 %v691
      %1078 = vmatpush.bf16.msra.mxu0 %v687
      %1079 = vmatpush.bf16.msra.mxu0 %v683
      %1080 = vmatpush.bf16.msra.mxu0 %v679
      %1081 = vmatpush.bf16.msra.mxu0 %v675
      %1082 = vmatpush.bf16.msra.mxu0 %v671
      %1083 = vmatpush.bf16.msra.mxu0 %v667
      %1084 = vmatmul.bf16.gmra.mxu0 %v148
      %v1085 = vpop.f32.mrf.mxu0
      %v1086 = vadd.f32 0.0, %v1085
      %v1087 = vpop.f32.mrf.mxu0
      %1088 = vdwg.mxu0
      %1089 = vmatpush.bf16.msra.mxu0 %v727
      %1090 = vmatpush.bf16.msra.mxu0 %v723
      %1091 = vmatpush.bf16.msra.mxu0 %v719
      %1092 = vmatpush.bf16.msra.mxu0 %v715
      %1093 = vmatpush.bf16.msra.mxu0 %v711
      %1094 = vmatpush.bf16.msra.mxu0 %v707
      %1095 = vmatpush.bf16.msra.mxu0 %v703
      %1096 = vmatpush.bf16.msra.mxu0 %v699
      %1097 = vmatmul.bf16.gmra.mxu0 %v149
      %v1098 = vpop.f32.mrf.mxu0
      %v1099 = vadd.f32 %v1086, %v1098
      %v1100 = vpop.f32.mrf.mxu0
      %1101 = vdwg.mxu0
      %1102 = vmatpush.bf16.msra.mxu0 %v759
      %1103 = vmatpush.bf16.msra.mxu0 %v755
      %1104 = vmatpush.bf16.msra.mxu0 %v751
      %1105 = vmatpush.bf16.msra.mxu0 %v747
      %1106 = vmatpush.bf16.msra.mxu0 %v743
      %1107 = vmatpush.bf16.msra.mxu0 %v739
      %1108 = vmatpush.bf16.msra.mxu0 %v735
      %1109 = vmatpush.bf16.msra.mxu0 %v731
      %1110 = vmatmul.bf16.gmra.mxu0 %v150
      %v1111 = vpop.f32.mrf.mxu0
      %v1112 = vadd.f32 %v1099, %v1111
      %v1113 = vpop.f32.mrf.mxu0
      %1114 = vdwg.mxu0
      %1115 = vmatpush.bf16.msra.mxu0 %v791
      %1116 = vmatpush.bf16.msra.mxu0 %v787
      %1117 = vmatpush.bf16.msra.mxu0 %v783
      %1118 = vmatpush.bf16.msra.mxu0 %v779
      %1119 = vmatpush.bf16.msra.mxu0 %v775
      %1120 = vmatpush.bf16.msra.mxu0 %v771
      %1121 = vmatpush.bf16.msra.mxu0 %v767
      %1122 = vmatpush.bf16.msra.mxu0 %v763
      %1123 = vmatmul.bf16.gmra.mxu0 %v151
      %v1124 = vpop.f32.mrf.mxu0
      %v1125 = vadd.f32 %v1112, %v1124
      %v1126 = vpop.f32.mrf.mxu0
      %1127 = vdwg.mxu0
      %1128 = vst [vmem:[%s143] sm:$0xff] %v969
      %1129 = vst [vmem:[%s143 + $0x8] sm:$0xff] %v1021
      %1130 = vst [vmem:[%s143 + $0x10] sm:$0xff] %v1073
      %1131 = vst [vmem:[%s143 + $0x18] sm:$0xff] %v1125
      %p1132 = scmp.lt.s32.totalorder %s13, 1
      %s1133 = scalar_select %p1132, %s13, 1
      %s1134 = smul.addr %s1133, 4
      %s1135 = smul.addr %s1134, 8
      %s1136 = scalar_lea.vmem %s2, %s1135
      // Predicated region
      $region29: #{sem_ch_graph_conv.1} parent=27 // pred_check
        %p1137 = pneg %p78
      $region30: #{sem_ch_graph_conv.1} parent=27 // pred_check_branch
        %1139 = sbr.rel (%p1137) target = $region32
      $region31: #{sem_ch_graph_conv.1} parent=27 // pred_region
        _
      $region32: #{sem_ch_graph_conv.1} parent=27 // pred_fallthru
        _
    $region28: #{sem_ch_graph_conv.1} parent=5 // pred_fallthru
      _
    %p1140 = scmp.le.s32.totalorder 2, %s8
    // Predicated region
    $region33: #{sem_ch_graph_conv.1} parent=5 // pred_check
      %p1141 = pneg %p1140
    $region34: #{sem_ch_graph_conv.1} parent=5 // pred_check_branch
      %1143 = sbr.rel (%p1141) target = $region36
    $region35: #{sem_ch_graph_conv.1} parent=5 // pred_region
      %s1144 = ssub.s32 %s8, 2
      // Predicated region
      $region37: #{sem_ch_graph_conv.1} parent=35 // pred_check
        %p1145 = pneg %p84
      $region38: #{sem_ch_graph_conv.1} parent=35 // pred_check_branch
        %1147 = sbr.rel (%p1145) target = $region40
      $region39: #{sem_ch_graph_conv.1} parent=35 // pred_region
        %p1148 = scmp.lt.s32.totalorder %s14, 1
        %s1149 = scalar_select %p1148, %s14, 1
        %s1150 = smul.addr %s1149, 4
        %s1151 = smul.addr %s1150, 8
        %s1152 = scalar_lea.vmem %s2, %s1151
      $region40: #{sem_ch_graph_conv.1} parent=35 // pred_fallthru
        _
    $region36: #{sem_ch_graph_conv.1} parent=5 // pred_fallthru
      _
  $region6: #{sem_ch_graph_conv.1} parent=0 // loop_footer
    %s12 = sadd.s32 1, %s8
  $region7: #{sem_ch_graph_conv.1} parent=0 // loop_footer_branch
    %7 = sbr.rel target = $region3
  $region8: #{sem_ch_graph_conv.1} parent=0 // loop_exit
    _

</llo_original>
